<compile_context>
chip_gen: v5e
topology: v5e:2x2
jax: 0.10.0
libtpu: 0.0.40
codegen_flags: <defaults>
</compile_context>

<pallas_src>
import functools

import jax
import jax.numpy as jnp
from jax.experimental import pallas as pl
from jax.experimental.pallas import tpu as pltpu


# ----------------------------------------------------------------------------
# Pallas kernel
# ----------------------------------------------------------------------------
def _contrastive_loss_kernel(margin, inv_n, batch, block_b, steps_per_split,
                             o1_ref, o2_ref, lbl_ref, loss_ref, acc_ref):
    """Grid = (split, step). Running sum per split kept in a (1,1) VMEM scratch."""
    c = pl.program_id(0)          # parallel split (maps to a TensorCore on v7x)
    i = pl.program_id(1)          # reduction step within this split

    @pl.when(i == 0)
    def _():
        acc_ref[...] = jnp.zeros_like(acc_ref)

    # Cast native-dtype (f32/bf16) inputs to f32 on the vreg, not in the wrapper.
    diff = (o1_ref[...].astype(jnp.float32)
            - o2_ref[...].astype(jnp.float32) + 1e-6)            # (Bblk, D)
    sq = jnp.sum(diff * diff, axis=-1, keepdims=True)            # (Bblk, 1) lane reduce
    dist = jnp.sqrt(sq)                                          # only the hinge needs it

    lbl = lbl_ref[...]                                           # (Bblk, 1) f32
    hinge = jnp.maximum(margin - dist, 0.0)
    per_sample = (1.0 - lbl) * sq + lbl * (hinge * hinge)        # (Bblk, 1)

    # Tail mask for the cdiv grid: zero rows whose global index is >= batch.
    start = (c * steps_per_split + i) * block_b
    row = start + jax.lax.broadcasted_iota(jnp.int32, per_sample.shape, 0)
    per_sample = jnp.where(row < batch, per_sample, 0.0)

    # Partial batch sum for this tile (sublane reduce), accumulate in VMEM.
    acc_ref[...] += jnp.sum(per_sample, axis=0, keepdims=True)

    @pl.when(i == pl.num_programs(1) - 1)
    def _():
        # Each split owns a lane-dense (8,128) output block; broadcast the scalar
        # partial over it (wrapper reads element [c*8, 0]).
        loss_ref[...] = jnp.broadcast_to((0.5 * inv_n) * acc_ref[...],
                                         loss_ref.shape)


# ----------------------------------------------------------------------------
# Wrapper
# ----------------------------------------------------------------------------
@functools.partial(jax.jit, static_argnames=("margin", "block_b"))
def contrastive_loss(output1, output2, label, margin=1.0, block_b=None):
    """output1, output2: (B, D); label: (B,) of {0,1}. Returns scalar f32 loss."""
    B, D = output1.shape
    o1 = output1
    o2 = output2.astype(output1.dtype)          # keep native dtype (no f32 upcast)
    lbl2d = label.reshape(B, 1).astype(jnp.float32)

    itemsize = output1.dtype.itemsize
    align = {4: 8, 2: 16, 1: 32}.get(itemsize, 8)   # sublane packing per dtype

    if block_b is None:
        if B <= align:
            block_b = B                          # full-array block (always legal)
        else:
            # ~2 MiB per input tile => ~8 MiB double-buffered for both inputs:
            # safe under v5e's 16 MiB scoped default and v7x's 64 MiB VMEM.
            target_rows = max(align, (2 * 1024 * 1024) // max(1, D * itemsize))
            target_rows = (target_rows // align) * align
            block_b = min(target_rows, ((B + align - 1) // align) * align)
    assert block_b == B or block_b % align == 0

    num_blocks = pl.cdiv(B, block_b)
    # Use both TensorCores on v7x when there is enough work; harmless elsewhere.
    nsplit = 2 if num_blocks >= 2 else 1
    steps = pl.cdiv(num_blocks, nsplit)

    kernel = functools.partial(_contrastive_loss_kernel, float(margin),
                               1.0 / float(B), B, block_b, steps)

    def in_map(c, i):
        # Clamp (fully-out-of-range grid points are zeroed by the in-kernel mask).
        return (jnp.minimum(c * steps + i, num_blocks - 1), 0)

    out = pl.pallas_call(
        kernel,
        out_shape=jax.ShapeDtypeStruct((nsplit * 8, 128), jnp.float32),
        grid_spec=pltpu.PrefetchScalarGridSpec(
            num_scalar_prefetch=0,
            grid=(nsplit, steps),
            in_specs=[
                pl.BlockSpec((block_b, D), in_map),   # output1 tile (native dtype)
                pl.BlockSpec((block_b, D), in_map),   # output2 tile (native dtype)
                pl.BlockSpec((block_b, 1), in_map),   # label tile
            ],
            out_specs=pl.BlockSpec((8, 128), lambda c, i: (c, 0)),
            scratch_shapes=[pltpu.VMEM((1, 1), jnp.float32)],   # running sum
        ),
        compiler_params=pltpu.CompilerParams(
            dimension_semantics=("parallel", "arbitrary")),
        cost_estimate=pl.CostEstimate(
            flops=int(5 * B * D),
            transcendentals=int(B),
            bytes_accessed=int(2 * B * D * itemsize + 4 * B
                               + nsplit * 8 * 128 * 4)),
    )(o1, o2, lbl2d)

    # One broadcast partial per split lives at rows 0, 8, 16, ... -> sum them.
    return jnp.sum(out[::8, 0])


# ----------------------------------------------------------------------------
# Pure-JAX reference (matches the PyTorch module)
# ----------------------------------------------------------------------------
def _reference_loss(o1, o2, lbl, margin=1.0):
    o1 = o1.astype(jnp.float32)
    o2 = o2.astype(jnp.float32)
    d = jnp.sqrt(jnp.sum((o1 - o2 + 1e-6) ** 2, axis=-1))
    per = (1.0 - lbl) * d ** 2 + lbl * jnp.maximum(margin - d, 0.0) ** 2
    return 0.5 * jnp.mean(per)


# ----------------------------------------------------------------------------
if __name__ == "__main__":
    MARGIN = 1.0
    root = jax.random.PRNGKey(0)

    # --- main demo shape: (8, 128) f32, single grid step -------------------
    k1, k2, k3, k4, k5, k6 = jax.random.split(root, 6)
    o1 = jax.random.normal(k1, (8, 128), jnp.float32)
    o2 = jax.random.normal(k2, (8, 128), jnp.float32)
    lbl = jax.random.bernoulli(k3, 0.5, (8,)).astype(jnp.float32)

    loss = jax.block_until_ready(contrastive_loss(o1, o2, lbl, margin=MARGIN))
    ref = _reference_loss(o1, o2, lbl, margin=MARGIN)
    assert loss.shape == ()
    assert jnp.allclose(loss, ref, rtol=1e-5, atol=1e-5), (loss, ref)

    # --- awkward batch (tail mask path): B=13 -------------------------------
    o1b = jax.random.normal(k4, (13, 128), jnp.float32)
    o2b = jax.random.normal(k5, (13, 128), jnp.float32)
    lblb = jax.random.bernoulli(k6, 0.5, (13,)).astype(jnp.float32)
    loss_b = jax.block_until_ready(contrastive_loss(o1b, o2b, lblb, margin=MARGIN))
    ref_b = _reference_loss(o1b, o2b, lblb, margin=MARGIN)
    assert jnp.allclose(loss_b, ref_b, rtol=1e-5, atol=1e-5), (loss_b, ref_b)

    # --- multi-block + 2-way parallel split path: B=24, forced block_b=8 ----
    loss_c = jax.block_until_ready(
        contrastive_loss(o1b[:8].repeat(3, axis=0), o2b[:8].repeat(3, axis=0),
                         lblb[:8].repeat(0 + 3), margin=MARGIN, block_b=8))
    ref_c = _reference_loss(o1b[:8].repeat(3, axis=0), o2b[:8].repeat(3, axis=0),
                            lblb[:8].repeat(3), margin=MARGIN)
    assert jnp.allclose(loss_c, ref_c, rtol=1e-5, atol=1e-5), (loss_c, ref_c)

    # --- bf16 inputs fed natively into the kernel ---------------------------
    loss_h = jax.block_until_ready(
        contrastive_loss(o1.astype(jnp.bfloat16), o2.astype(jnp.bfloat16),
                         lbl, margin=MARGIN))
    ref_h = _reference_loss(o1.astype(jnp.bfloat16), o2.astype(jnp.bfloat16),
                            lbl, margin=MARGIN)
    assert jnp.allclose(loss_h, ref_h, rtol=1e-4, atol=1e-4), (loss_h, ref_h)

    print("KERNEL_OK")
</pallas_src>

<mosaic_0001>
module attributes {stable_mosaic.version = 11 : i64} {
  func.func @_contrastive_loss_kernel(%arg0: i32, %arg1: i32, %arg2: memref<8x128xf32, #tpu.memory_space<vmem>>, %arg3: memref<8x128xf32, #tpu.memory_space<vmem>>, %arg4: memref<8x1xf32, #tpu.memory_space<vmem>>, %arg5: memref<8x128xf32, #tpu.memory_space<vmem>>, %arg6: memref<1x1xf32, #tpu.memory_space<vmem>>) attributes {dimension_semantics = [#tpu.dimension_semantics<parallel>, #tpu.dimension_semantics<arbitrary>], iteration_bounds = array<i64: 1, 1>, scalar_prefetch = 0 : i64, scratch_operands = 1 : i64, tpu.core_type = #tpu.core_type<tc>, window_params = [{transform_indices = @transform_0, window_bounds = array<i64: 8, 128>}, {transform_indices = @transform_1, window_bounds = array<i64: 8, 128>}, {transform_indices = @transform_2, window_bounds = array<i64: 8, 1>}, {transform_indices = @transform_3, window_bounds = array<i64: 8, 128>}]} {
    %c0_i32 = arith.constant 0 : i32
    %0 = arith.cmpi eq, %arg1, %c0_i32 : i32
    %1 = arith.extui %0 : i1 to i32
    %c0_i32_0 = arith.constant 0 : i32
    %2 = arith.cmpi ne, %1, %c0_i32_0 : i32
    scf.if %2 {
      %cst_19 = arith.constant 0.000000e+00 : f32
      %41 = vector.broadcast %cst_19 : f32 to vector<1x1xf32>
      %c0_20 = arith.constant 0 : index
      %c0_21 = arith.constant 0 : index
      %42 = vector.load %arg6[%c0_20, %c0_21] : memref<1x1xf32, #tpu.memory_space<vmem>>, vector<1x1xf32>
      tpu.vector_store %arg6[%c0_20, %c0_21], %41 {strides = array<i32>} : memref<1x1xf32, #tpu.memory_space<vmem>>, vector<1x1xf32>,
    } else {
    }
    %c0 = arith.constant 0 : index
    %c0_1 = arith.constant 0 : index
    %3 = vector.load %arg2[%c0, %c0_1] : memref<8x128xf32, #tpu.memory_space<vmem>>, vector<8x128xf32>
    %c0_2 = arith.constant 0 : index
    %c0_3 = arith.constant 0 : index
    %4 = vector.load %arg3[%c0_2, %c0_3] : memref<8x128xf32, #tpu.memory_space<vmem>>, vector<8x128xf32>
    %5 = arith.subf %3, %4 : vector<8x128xf32>
    %cst = arith.constant 9.99999997E-7 : f32
    %6 = vector.broadcast %cst : f32 to vector<8x128xf32>
    %7 = arith.addf %5, %6 : vector<8x128xf32>
    %8 = arith.mulf %7, %7 : vector<8x128xf32>
    %cst_4 = arith.constant dense<0.000000e+00> : vector<8xf32>
    %9 = vector.multi_reduction <add>, %8, %cst_4 [1] : vector<8x128xf32> to vector<8xf32>
    %10 = vector.shape_cast %9 : vector<8xf32> to vector<8x1xf32>
    %11 = math.sqrt %10 : vector<8x1xf32>
    %c0_5 = arith.constant 0 : index
    %c0_6 = arith.constant 0 : index
    %12 = vector.load %arg4[%c0_5, %c0_6] : memref<8x1xf32, #tpu.memory_space<vmem>>, vector<8x1xf32>
    %cst_7 = arith.constant 1.000000e+00 : f32
    %13 = vector.broadcast %cst_7 : f32 to vector<8x1xf32>
    %14 = arith.subf %13, %11 : vector<8x1xf32>
    %cst_8 = arith.constant 0.000000e+00 : f32
    %15 = vector.broadcast %cst_8 : f32 to vector<8x1xf32>
    %16 = arith.maximumf %14, %15 : vector<8x1xf32>
    %cst_9 = arith.constant 1.000000e+00 : f32
    %17 = vector.broadcast %cst_9 : f32 to vector<8x1xf32>
    %18 = arith.subf %17, %12 : vector<8x1xf32>
    %19 = arith.mulf %18, %10 : vector<8x1xf32>
    %20 = arith.mulf %16, %16 : vector<8x1xf32>
    %21 = arith.mulf %12, %20 : vector<8x1xf32>
    %22 = arith.addf %19, %21 : vector<8x1xf32>
    %c1_i32 = arith.constant 1 : i32
    %23 = arith.muli %arg0, %c1_i32 : i32
    %24 = arith.addi %23, %arg1 : i32
    %c8_i32 = arith.constant 8 : i32
    %25 = arith.muli %24, %c8_i32 : i32
    %26 = tpu.iota {dimensions = array<i32: 0>} : vector<8x1xi32>
    %27 = vector.broadcast %25 : i32 to vector<8x1xi32>
    %28 = arith.addi %27, %26 : vector<8x1xi32>
    %c8_i32_10 = arith.constant 8 : i32
    %29 = vector.broadcast %c8_i32_10 : i32 to vector<8x1xi32>
    %30 = arith.cmpi slt, %28, %29 : vector<8x1xi32>
    %cst_11 = arith.constant 0.000000e+00 : f32
    %31 = vector.broadcast %cst_11 : f32 to vector<8x1xf32>
    %32 = arith.select %30, %22, %31 : vector<8x1xi1>, vector<8x1xf32>
    %c0_12 = arith.constant 0 : index
    %c0_13 = arith.constant 0 : index
    %33 = vector.load %arg6[%c0_12, %c0_13] : memref<1x1xf32, #tpu.memory_space<vmem>>, vector<1x1xf32>
    %cst_14 = arith.constant dense<0.000000e+00> : vector<1xf32>
    %34 = vector.multi_reduction <add>, %32, %cst_14 [0] : vector<8x1xf32> to vector<1xf32>
    %35 = vector.shape_cast %34 : vector<1xf32> to vector<1x1xf32>
    %36 = arith.addf %33, %35 : vector<1x1xf32>
    %c0_15 = arith.constant 0 : index
    %c0_16 = arith.constant 0 : index
    %37 = vector.load %arg6[%c0_15, %c0_16] : memref<1x1xf32, #tpu.memory_space<vmem>>, vector<1x1xf32>
    tpu.vector_store %arg6[%c0_15, %c0_16], %36 {strides = array<i32>} : memref<1x1xf32, #tpu.memory_space<vmem>>, vector<1x1xf32>,
    %c0_i32_17 = arith.constant 0 : i32
    %38 = arith.cmpi eq, %arg1, %c0_i32_17 : i32
    %39 = arith.extui %38 : i1 to i32
    %c0_i32_18 = arith.constant 0 : i32
    %40 = arith.cmpi ne, %39, %c0_i32_18 : i32
    scf.if %40 {
      %c0_19 = arith.constant 0 : index
      %c0_20 = arith.constant 0 : index
      %41 = vector.load %arg6[%c0_19, %c0_20] : memref<1x1xf32, #tpu.memory_space<vmem>>, vector<1x1xf32>
      %cst_21 = arith.constant 6.250000e-02 : f32
      %42 = vector.broadcast %cst_21 : f32 to vector<1x1xf32>
      %43 = arith.mulf %42, %41 : vector<1x1xf32>
      %44 = vector.shape_cast %43 : vector<1x1xf32> to vector<1x1xf32>
      %45 = vector.broadcast %44 : vector<1x1xf32> to vector<8x128xf32>
      %c0_22 = arith.constant 0 : index
      %c0_23 = arith.constant 0 : index
      %46 = vector.load %arg5[%c0_22, %c0_23] : memref<8x128xf32, #tpu.memory_space<vmem>>, vector<8x128xf32>
      tpu.vector_store %arg5[%c0_22, %c0_23], %45 {strides = array<i32>} : memref<8x128xf32, #tpu.memory_space<vmem>>, vector<8x128xf32>,
    } else {
    }
    return
  }
  func.func @transform_0(%arg0: i32, %arg1: i32) -> (i32, i32) {
    %c1_i32 = arith.constant 1 : i32
    %0 = arith.muli %arg0, %c1_i32 : i32
    %1 = arith.addi %0, %arg1 : i32
    %c0_i32 = arith.constant 0 : i32
    %2 = arith.minsi %1, %c0_i32 : i32
    %c0_i32_0 = arith.constant 0 : i32
    %c0_i32_1 = arith.constant 0 : i32
    return %2, %c0_i32_0 : i32, i32
  }
  func.func @transform_1(%arg0: i32, %arg1: i32) -> (i32, i32) {
    %c1_i32 = arith.constant 1 : i32
    %0 = arith.muli %arg0, %c1_i32 : i32
    %1 = arith.addi %0, %arg1 : i32
    %c0_i32 = arith.constant 0 : i32
    %2 = arith.minsi %1, %c0_i32 : i32
    %c0_i32_0 = arith.constant 0 : i32
    %c0_i32_1 = arith.constant 0 : i32
    return %2, %c0_i32_0 : i32, i32
  }
  func.func @transform_2(%arg0: i32, %arg1: i32) -> (i32, i32) {
    %c1_i32 = arith.constant 1 : i32
    %0 = arith.muli %arg0, %c1_i32 : i32
    %1 = arith.addi %0, %arg1 : i32
    %c0_i32 = arith.constant 0 : i32
    %2 = arith.minsi %1, %c0_i32 : i32
    %c0_i32_0 = arith.constant 0 : i32
    %c0_i32_1 = arith.constant 0 : i32
    return %2, %c0_i32_0 : i32, i32
  }
  func.func @transform_3(%arg0: i32, %arg1: i32) -> (i32, i32) {
    %c0_i32 = arith.constant 0 : i32
    %c0_i32_0 = arith.constant 0 : i32
    return %arg0, %c0_i32 : i32, i32
  }
}

</mosaic_0001>

<llo_original>
// kernel: contrastive_loss.1
$region0: #{contrastive_loss.1}
  #allocation0 [shape = 'u32[]', space=smem, size = 0x4, offset = 0x4, fixed_abs, tag = 'smem constant byte address 0x4 - core index']
  #allocation1 [shape = 'u32[72,128]{1,0:T(1,128)}', space=vmem, size = 0x9000, scoped, tag = 'internal scratch']
  #allocation2 [shape = 'f32[1,1]{1,0:T(1,128)}', space=vmem, size = 0x200, scoped, tag = 'scratch operand']
  %s0 = inlined_call_operand.vmem [shape: f32[8,128], index: 0, kind: input, shape index: {}]
  %s1 = inlined_call_operand.hbm [shape: f32[8,128], index: 1, kind: input, shape index: {}]
  %s2 = inlined_call_operand.vmem [shape: f32[8,1], index: 2, kind: input, shape index: {}]
  %s3 = inlined_call_operand.vmem [shape: f32[8,128], index: 3, kind: output, shape index: {}]
  %s4 = sld [smem:[#allocation0]]
  $region34: #{contrastive_loss.1} parent=0
    _
  %s6 = ssub.s32 1, %s4
  %s7 = scalar_select 0, %s6, %s4
  $region1: #{contrastive_loss.1} parent=0
    #allocation3 [shape = 'u8[4096]{0}', space=vmem, size = 0x1000, scoped, tag = 'input window, operand 1, single buffered']
    #allocation4 [shape = 's32[1]{0}', space=sflag, size = 0x4, scoped, tag = 'scoped memory for contrastive_loss.1']
    %8 = vsyncpa [#allocation4], 0
    // Predicated region
    $region2: #{contrastive_loss.1} parent=1 // pred_check
      _
    $region3: #{contrastive_loss.1} parent=1 // pred_check_branch
      %10 = sbr.rel (0) target = $region5
    $region4: #{contrastive_loss.1} parent=1 // pred_region
      %s11 = sadd.s32 0, 0
      %p12 = scmp.lt.s32.totalorder %s11, 0
      %s13 = scalar_select %p12, %s11, 0
      %p14 = scmp.lt.s32.totalorder %s13, 0
      %s15 = scalar_select %p14, %s13, 0
      %s16 = smul.addr %s15, 8
      %s17 = scalar_lea.vmem %s0, %s16
      %s18 = sadd.s32 0, 0
      %p19 = scmp.lt.s32.totalorder %s18, 0
      %s20 = scalar_select %p19, %s18, 0
    $region5: #{contrastive_loss.1} parent=1 // pred_fallthru
      _
    // Predicated region
    $region6: #{contrastive_loss.1} parent=1 // pred_check
      _
    $region7: #{contrastive_loss.1} parent=1 // pred_check_branch
      %22 = sbr.rel (0) target = $region9
    $region8: #{contrastive_loss.1} parent=1 // pred_region
      %s23 = sadd.s32 0, 0
      %p24 = scmp.lt.s32.totalorder %s23, 0
      %s25 = scalar_select %p24, %s23, 0
      %27 = vsyncadd [#allocation4], 0
      %s28 = smul.addr %s25, 8
      %s29 = scalar_lea.hbm %s1, %s28
      %s31 = sshll.u32 %s29, 4
      %s32 = int_to_ptr.hbm [resolvable:$true] %s31
      %s33 = sshll.u32 [#allocation3], 4
      %s34 = int_to_ptr.vmem [resolvable:$true] %s33
      %36 = dma.hbm_to_vmem [thread:$0]  %s32, 128, %s34, [#allocation4]
    $region9: #{contrastive_loss.1} parent=1 // pred_fallthru
      _
    // Predicated region
    $region10: #{contrastive_loss.1} parent=1 // pred_check
      _
    $region11: #{contrastive_loss.1} parent=1 // pred_check_branch
      %38 = sbr.rel (0) target = $region13
    $region12: #{contrastive_loss.1} parent=1 // pred_region
      %s39 = sadd.s32 0, 0
      %p40 = scmp.lt.s32.totalorder %s39, 0
      %s41 = scalar_select %p40, %s39, 0
      %p42 = scmp.lt.s32.totalorder %s41, 0
      %s43 = scalar_select %p42, %s41, 0
      %s44 = smul.addr %s43, 8
      %s45 = scalar_lea.vmem %s2, %s44
      %s46 = sadd.s32 0, 0
      %p47 = scmp.lt.s32.totalorder %s46, 0
      %s48 = scalar_select %p47, %s46, 0
    $region13: #{contrastive_loss.1} parent=1 // pred_fallthru
      _
    // Predicated region
    $region14: #{contrastive_loss.1} parent=1 // pred_check
      _
    $region15: #{contrastive_loss.1} parent=1 // pred_check_branch
      %50 = sbr.rel (0) target = $region17
    $region16: #{contrastive_loss.1} parent=1 // pred_region
      %52 = dma.done [#allocation4], 128
    $region17: #{contrastive_loss.1} parent=1 // pred_fallthru
      _
    %s53 = sadd.s32 0, 0
    %p54 = scmp.lt.s32.totalorder %s53, 0
    %s55 = scalar_select %p54, %s53, 0
    %p56 = scmp.lt.s32.totalorder %s55, 0
    %s57 = scalar_select %p56, %s55, 0
    %s58 = smul.addr %s57, 8
    %s59 = scalar_lea.vmem %s0, %s58
    %s60 = sadd.s32 0, 0
    %p61 = scmp.lt.s32.totalorder %s60, 0
    %s62 = scalar_select %p61, %s60, 0
    %p63 = scmp.lt.s32.totalorder %s62, 0
    %s64 = scalar_select %p63, %s62, 0
    %s65 = smul.addr %s64, 8
    %s66 = scalar_lea.vmem %s2, %s65
    %s67 = sadd.s32 0, 0
    %p68 = scmp.lt.s32.totalorder %s67, 0
    %s69 = scalar_select %p68, %s67, 0
    %p70 = scmp.lt.s32.totalorder %s69, 0
    %s71 = scalar_select %p70, %s69, 0
    %s72 = smul.addr %s71, 8
    %s73 = scalar_lea.vmem %s0, %s72
    %s74 = sadd.s32 0, 0
    %p75 = scmp.lt.s32.totalorder %s74, 0
    %s76 = scalar_select %p75, %s74, 0
    %s77 = sadd.s32 0, 0
    %p78 = scmp.lt.s32.totalorder %s77, 0
    %s79 = scalar_select %p78, %s77, 0
    %s80 = sadd.s32 0, 0
    %p81 = scmp.lt.s32.totalorder %s80, 0
    %s82 = scalar_select %p81, %s80, 0
    %p83 = scmp.lt.s32.totalorder %s82, 0
    %s84 = scalar_select %p83, %s82, 0
    %s85 = smul.addr %s84, 8
    %s86 = scalar_lea.vmem %s2, %s85
    %s87 = sadd.s32 0, 0
    %p88 = scmp.lt.s32.totalorder %s87, 0
    %s89 = scalar_select %p88, %s87, 0
    %p90 = scmp.eq.s32.totalorder 0, 0
    // Predicated region
    $region18: #{contrastive_loss.1} parent=1 // pred_check
      %p91 = pneg %p90
    $region19: #{contrastive_loss.1} parent=1 // pred_check_branch
      %93 = sbr.rel (%p91) target = $region21
    $region20: #{contrastive_loss.1} parent=1 // pred_region
      %vm94 = vcmask 0
      %95 = vst.msk [vmem:[#allocation2] sm:$0x1] %vm94, 0.0
    $region21: #{contrastive_loss.1} parent=1 // pred_fallthru
      _
    %v96 = vld [vmem:[%s73] sm:$0xff]
    %v97 = vld [vmem:[#allocation3] sm:$0xff]
    %v98 = vsub.f32 %v96, %v97
    %v99 = vadd.f32 %v98, 1e-06
    %v100 = vmul.f32 %v99, %v99
    %101 = vadd.xlane.f32.xlu0 %v100
    %v102 = vpop.xlane.xlu0 %101
    %v103 = vrsqrt.pop %v102
    %v104 = vmul.f32 %v103, %v102
    %v105 = vmul.f32 %v104, %v103
    %v106 = vmul.f32 0.5, %v105
    %v107 = vsub.f32 1.5, %v106
    %v108 = vmul.f32 %v103, %v107
    %v109 = vmul.f32 %v102, %v108
    %vm110 = vcmp.eq.f32.partialorder %v102, inf
    %v111 = vsel %vm110, %v102, %v109
    %vm112 = vcmp.eq.f32.partialorder %v102, 0.0
    %v113 = vand.u32 %v102, 2147483648
    %v114 = vsel %vm112, %v113, %v111
    %v115 = vld [vmem:[%s86] sm:$0xff]
    %v116 = vsub.f32 1.0, %v114
    %v117 = vmax.f32 %v116, 0.0
    %v118 = vsub.f32 1.0, %v115
    %v119 = vmul.f32 %v118, %v102
    %v120 = vmul.f32 %v117, %v117
    %v121 = vmul.f32 %v115, %v120
    %v122 = vadd.f32 %v119, %v121
    %s123 = sadd.s32 0, 0
    %s124 = smul.u32 %s123, 8
    %v125 = vlaneseq
    %v126 = vshrl.u32 %v125, 7
    %v127 = vstv %s124
    %v128 = vadd.s32 %v127, %v126
    %vm129 = vcmp.lt.s32.totalorder %v128, 8
    %v130 = vsel %vm129, %v122, 0.0
    %v131 = vld [vmem:[#allocation2] sm:$0x1]
    %vm132 = vcmask 7168
    %v133 = vsel %vm132, %v130, 0.0
    %v134 = vrot.slane %v133, 4
    %v135 = vadd.f32 %v133, %v134
    %v136 = vrot.slane %v135, 2
    %v137 = vadd.f32 %v135, %v136
    %v138 = vrot.slane %v137, 1
    %v139 = vadd.f32 %v137, %v138
    %v140 = vadd.f32 %v131, %v139
    %vm141 = vcmask 0
    %142 = vst.msk [vmem:[#allocation2] sm:$0x1] %vm141, %v140
    // Predicated region
    $region22: #{contrastive_loss.1} parent=1 // pred_check
      %p143 = pneg %p90
    $region23: #{contrastive_loss.1} parent=1 // pred_check_branch
      %145 = sbr.rel (%p143) target = $region25
    $region24: #{contrastive_loss.1} parent=1 // pred_region
      %v146 = vld [vmem:[#allocation2] sm:$0x1]
      %v147 = vmul.f32 %v146, 0.0625
      %v149 = vperm.slane %v147, 0
      %150 = vset.pattern.permute.xlu0 0
      %151 = vperm.xlu0 %150, %v149
      %v152 = vpop.permute.xlu0 %151
      %154 = vst [vmem:[%s3] sm:$0xff] %v152
    $region25: #{contrastive_loss.1} parent=1 // pred_fallthru
      _
    // Predicated region
    $region26: #{contrastive_loss.1} parent=1 // pred_check
      _
    $region27: #{contrastive_loss.1} parent=1 // pred_check_branch
      %156 = sbr.rel (0) target = $region29
    $region28: #{contrastive_loss.1} parent=1 // pred_region
      _
    $region29: #{contrastive_loss.1} parent=1 // pred_fallthru
      _
    // Predicated region
    $region30: #{contrastive_loss.1} parent=1 // pred_check
      _
    $region31: #{contrastive_loss.1} parent=1 // pred_check_branch
      %158 = sbr.rel (0) target = $region33
    $region32: #{contrastive_loss.1} parent=1 // pred_region
      _
    $region33: #{contrastive_loss.1} parent=1 // pred_fallthru
      _
    %159 = vsyncpa [#allocation4], 1

</llo_original>
